<compile_context>
chip_gen: v7x
topology: tpu7x:2x2x1
jax: 0.10.0
libtpu: 0.0.40
codegen_flags: <defaults>
</compile_context>

<pallas_src>
import collections

import jax
import jax.numpy as jnp
from jax.experimental import pallas as pl
from jax.experimental.pallas import tpu as pltpu


def _round_up(x, m):
    return (x + m - 1) // m * m


def _vmem_capacity_bytes():
    try:
        return int(pltpu.get_tpu_info().vmem_capacity_bytes)
    except Exception:
        return 64 << 20  # conservative fallback (v7x per-TensorCore VMEM)


PackedParams = collections.namedtuple(
    "PackedParams", ["w1", "b1", "wd", "b2d", "tile_h"])


def pack_params(w1, b1, w2, b2):
    """One-time parameter packing (hoisted out of the per-call path).

    w1: [E, H], b1: [H], w2: [H, 2], b2: [2]
    Returns lane-dense, 128-padded operands:
      w1  -> [E, H_pad] bf16 (MXU operand)
      b1  -> [1, H_pad] f32
      wd  -> [1, H_pad] f32  (w2[:,1] - w2[:,0]; padded lanes are zero)
      b2d -> [1, 1]     f32  (b2[1] - b2[0]; SMEM scalar)
    """
    E, H = w1.shape
    budget = int(0.4 * _vmem_capacity_bytes())

    # Keep w1 fully resident (single hidden tile) unless its double-buffered
    # bf16 block would eat more than ~half the VMEM budget (v7x: 64 MiB).
    tile_h = _round_up(H, 128)
    while tile_h > 128 and (2 * E * tile_h * 2) > budget // 2:
        tile_h = _round_up(tile_h // 2, 128)
    H_pad = _round_up(H, tile_h)

    f32, bf16 = jnp.float32, jnp.bfloat16
    w1_p = jnp.zeros((E, H_pad), bf16).at[:, :H].set(w1.astype(bf16))
    b1_p = jnp.zeros((1, H_pad), f32).at[0, :H].set(b1.astype(f32))
    wd_p = jnp.zeros((1, H_pad), f32).at[0, :H].set(
        (w2[:, 1] - w2[:, 0]).astype(f32))
    b2d = (b2[1] - b2[0]).astype(f32).reshape(1, 1)
    return PackedParams(w1_p, b1_p, wd_p, b2d, tile_h)


def _mlp_logsoftmax2_kernel(x_ref, w1_ref, b1_ref, wd_ref, b2d_ref, o_ref, acc_ref):
    j = pl.program_id(1)

    @pl.when(j == 0)
    def _():
        acc_ref[...] = jnp.zeros_like(acc_ref)

    # Layer 1 on this hidden tile: bf16 operands on the MXU, f32 accumulate.
    x = x_ref[...].astype(jnp.bfloat16)            # in-kernel cast, one VPU pass
    h = jnp.dot(x, w1_ref[...], preferred_element_type=jnp.float32)
    h = jnp.maximum(h + b1_ref[...], 0.0)          # bias + ReLU in f32

    # Layer 2 (2 classes) as a VPU multiply + lane reduce instead of an N=2
    # MXU matmul: accumulate d = logit_1 - logit_0 across hidden tiles.
    # Padded lanes of wd are zero, so the reduction over the padded width is exact.
    acc_ref[...] += jnp.sum(h * wd_ref[...], axis=-1, keepdims=True)

    @pl.when(j == pl.num_programs(1) - 1)
    def _():
        d = acc_ref[...] + b2d_ref[0, 0]                        # [tile_b, 1]
        # Stable 2-class log-softmax: log_p1 = -softplus(-d), log_p0 = -softplus(d)
        t = jnp.log1p(jnp.exp(-jnp.abs(d)))
        o_ref[:, 0:1] = (-(t + jnp.maximum(d, 0.0))).astype(o_ref.dtype)
        o_ref[:, 1:2] = (-(t + jnp.maximum(-d, 0.0))).astype(o_ref.dtype)


def end_instructions_classifier(hidden_state, params, *, tile_b=None):
    """hidden_state: [B, instr_embed_dim] f32; params: PackedParams (pack once).
    Returns log-probabilities [B, 2] f32 (PyTorch LogSoftmax(dim=1) semantics)."""
    B, E = hidden_state.shape
    E_w, H_pad = params.w1.shape
    assert E == E_w, (E, E_w)
    tile_h = params.tile_h
    nh = H_pad // tile_h

    vmem_cap = _vmem_capacity_bytes()
    budget = int(0.4 * vmem_cap)

    # Sublane-align the batch so (tile_b, E) block shapes are legal even when
    # B is not a multiple of 8 (tiny pad, touched only when needed).
    B_eff = _round_up(max(B, 1), 8)
    x_in = hidden_state if B_eff == B else jnp.pad(
        hidden_state, ((0, B_eff - B), (0, 0)))

    def footprint(tb):
        return (2 * tb * E * 4            # x tiles (f32, double-buffered)
                + 2 * E * tile_h * 2      # w1 block (bf16, double-buffered)
                + 2 * 2 * tile_h * 4      # b1 + w_delta blocks (f32)
                + 2 * tb * 2 * 4          # out tiles (f32, double-buffered)
                + 2 * tb * tile_h * 4     # f32 h + one elementwise temp
                + tb * 4)                 # d accumulator scratch

    if tile_b is None:
        # Large tiles amortize the ~0.35us/step grid overhead; shrink only if
        # the (intermediate-inclusive) footprint exceeds the VMEM budget.
        tile_b = min(4096, B_eff)
        while tile_b > 8 and footprint(tile_b) > budget:
            tile_b = _round_up(tile_b // 2, 8)
    tile_b = min(_round_up(tile_b, 8), B_eff)

    grid = (pl.cdiv(B_eff, tile_b), nh)
    vmem_limit = int(min(int(0.85 * vmem_cap),
                         max(4 * footprint(tile_b), 16 << 20)))

    out = pl.pallas_call(
        _mlp_logsoftmax2_kernel,
        out_shape=jax.ShapeDtypeStruct((B_eff, 2), jnp.float32),
        grid_spec=pltpu.PrefetchScalarGridSpec(
            num_scalar_prefetch=0,
            grid=grid,
            in_specs=[
                pl.BlockSpec((tile_b, E), lambda i, j: (i, 0)),     # x: one f32 pass
                pl.BlockSpec((E, tile_h), lambda i, j: (0, j)),     # w1: resident / H-streamed
                pl.BlockSpec((1, tile_h), lambda i, j: (0, j)),     # b1
                pl.BlockSpec((1, tile_h), lambda i, j: (0, j)),     # w2[:,1]-w2[:,0]
                pl.BlockSpec(memory_space=pltpu.MemorySpace.SMEM),  # b2[1]-b2[0] scalar
            ],
            out_specs=pl.BlockSpec((tile_b, 2), lambda i, j: (i, 0)),
            scratch_shapes=[pltpu.VMEM((tile_b, 1), jnp.float32)],
        ),
        compiler_params=pltpu.CompilerParams(
            # TODO(synk): on v7x confirm both TensorCores pick up the batch
            # axis; if xprof shows one core idle, switch to pltpu.CORE_PARALLEL.
            dimension_semantics=("parallel", "arbitrary"),
            vmem_limit_bytes=vmem_limit,
        ),
    )(x_in, params.w1, params.b1, params.wd, params.b2d)
    return out if B_eff == B else out[:B]


def _init_params(key, instr_embed_dim, hidden_dim):
    # Deterministic synthetic init (PyTorch-style uniform fan-in bounds).
    k1, k2, k3, k4 = jax.random.split(key, 4)
    bound1 = 1.0 / jnp.sqrt(instr_embed_dim)
    bound2 = 1.0 / jnp.sqrt(hidden_dim)
    w1 = jax.random.uniform(k1, (instr_embed_dim, hidden_dim), jnp.float32,
                            -bound1, bound1)
    b1 = jax.random.uniform(k2, (hidden_dim,), jnp.float32, -bound1, bound1)
    w2 = jax.random.uniform(k3, (hidden_dim, 2), jnp.float32, -bound2, bound2)
    b2 = jax.random.uniform(k4, (2,), jnp.float32, -bound2, bound2)
    return w1, b1, w2, b2


if __name__ == "__main__":
    batch = 8
    instr_embed_dim = 32
    hidden_dim = 32

    key = jax.random.PRNGKey(0)
    k_x, k_p = jax.random.split(key)
    hidden_state = jax.random.normal(k_x, (batch, instr_embed_dim), jnp.float32)
    w1, b1, w2, b2 = _init_params(k_p, instr_embed_dim, hidden_dim)

    # Pack once (hoisted out of the per-call path), reuse for every forward.
    params = pack_params(w1, b1, w2, b2)
    log_probs = end_instructions_classifier(hidden_state, params)
    jax.block_until_ready(log_probs)

    # Reference matched to the kernel's bf16 matmul operands (f32 accumulate).
    xb = hidden_state.astype(jnp.bfloat16)
    w1b = w1.astype(jnp.bfloat16)
    h_ref = jnp.maximum(jnp.dot(xb, w1b, preferred_element_type=jnp.float32) + b1, 0.0)
    ref_bf16 = jax.nn.log_softmax(h_ref @ w2 + b2, axis=1)
    assert jnp.allclose(log_probs, ref_bf16, atol=2e-3, rtol=2e-3), "bf16-matched ref mismatch"

    # Looser sanity check vs full-f32 PyTorch semantics (bf16 matmul operands
    # deviate slightly; error grows with instr_embed_dim).
    h_f32 = jnp.maximum(hidden_state @ w1 + b1, 0.0)
    ref_f32 = jax.nn.log_softmax(h_f32 @ w2 + b2, axis=1)
    assert jnp.allclose(log_probs, ref_f32, atol=5e-2, rtol=5e-2), "f32 ref mismatch"
    assert bool(jnp.all(jnp.isfinite(log_probs)))

    print("KERNEL_OK")
</pallas_src>

<mosaic_0001>
module attributes {stable_mosaic.version = 11 : i64} {
  func.func @_mlp_logsoftmax2_kernel(%arg0: i32, %arg1: i32, %arg2: memref<8x32xf32, #tpu.memory_space<vmem>>, %arg3: memref<32x128xbf16, #tpu.memory_space<vmem>>, %arg4: memref<1x128xf32, #tpu.memory_space<vmem>>, %arg5: memref<1x128xf32, #tpu.memory_space<vmem>>, %arg6: memref<1x1xf32, #tpu.memory_space<smem>>, %arg7: memref<8x2xf32, #tpu.memory_space<vmem>>, %arg8: memref<8x1xf32, #tpu.memory_space<vmem>>) attributes {dimension_semantics = [#tpu.dimension_semantics<parallel>, #tpu.dimension_semantics<arbitrary>], iteration_bounds = array<i64: 1, 1>, scalar_prefetch = 0 : i64, scratch_operands = 1 : i64, tpu.core_type = #tpu.core_type<tc>, window_params = [{transform_indices = @transform_0, window_bounds = array<i64: 8, 32>}, {transform_indices = @transform_1, window_bounds = array<i64: 32, 128>}, {transform_indices = @transform_2, window_bounds = array<i64: 1, 128>}, {transform_indices = @transform_3, window_bounds = array<i64: 1, 128>}, {transform_indices = @transform_4, window_bounds = array<i64: 1, 1>}, {transform_indices = @transform_5, window_bounds = array<i64: 8, 2>}]} {
    %c0_i32 = arith.constant 0 : i32
    %0 = arith.cmpi eq, %arg1, %c0_i32 : i32
    %1 = arith.extui %0 : i1 to i32
    %c0_i32_0 = arith.constant 0 : i32
    %2 = arith.cmpi ne, %1, %c0_i32_0 : i32
    scf.if %2 {
      %cst_16 = arith.constant 0.000000e+00 : f32
      %23 = vector.broadcast %cst_16 : f32 to vector<8x1xf32>
      %c0_17 = arith.constant 0 : index
      %c0_18 = arith.constant 0 : index
      %24 = vector.load %arg8[%c0_17, %c0_18] : memref<8x1xf32, #tpu.memory_space<vmem>>, vector<8x1xf32>
      tpu.vector_store %arg8[%c0_17, %c0_18], %23 {strides = array<i32>} : memref<8x1xf32, #tpu.memory_space<vmem>>, vector<8x1xf32>,
    } else {
    }
    %c0 = arith.constant 0 : index
    %c0_1 = arith.constant 0 : index
    %3 = vector.load %arg2[%c0, %c0_1] : memref<8x32xf32, #tpu.memory_space<vmem>>, vector<8x32xf32>
    %4 = arith.truncf %3 : vector<8x32xf32> to vector<8x32xbf16>
    %c0_2 = arith.constant 0 : index
    %c0_3 = arith.constant 0 : index
    %5 = vector.load %arg3[%c0_2, %c0_3] : memref<32x128xbf16, #tpu.memory_space<vmem>>, vector<32x128xbf16>
    %cst = arith.constant dense<0.000000e+00> : vector<8x128xf32>
    %6 = tpu.matmul %4, %5, %cst {dimension_numbers = #tpu.dot_dimension_numbers<[1], [0], [0], [1], [0, 0, 1, 1], [], []>} : vector<8x32xbf16>, vector<32x128xbf16>, vector<8x128xf32> -> vector<8x128xf32>
    %c0_4 = arith.constant 0 : index
    %c0_5 = arith.constant 0 : index
    %7 = vector.load %arg4[%c0_4, %c0_5] : memref<1x128xf32, #tpu.memory_space<vmem>>, vector<1x128xf32>
    %8 = vector.broadcast %7 : vector<1x128xf32> to vector<8x128xf32>
    %9 = arith.addf %6, %8 : vector<8x128xf32>
    %cst_6 = arith.constant 0.000000e+00 : f32
    %10 = vector.broadcast %cst_6 : f32 to vector<8x128xf32>
    %11 = arith.maximumf %9, %10 : vector<8x128xf32>
    %c0_7 = arith.constant 0 : index
    %c0_8 = arith.constant 0 : index
    %12 = vector.load %arg8[%c0_7, %c0_8] : memref<8x1xf32, #tpu.memory_space<vmem>>, vector<8x1xf32>
    %c0_9 = arith.constant 0 : index
    %c0_10 = arith.constant 0 : index
    %13 = vector.load %arg5[%c0_9, %c0_10] : memref<1x128xf32, #tpu.memory_space<vmem>>, vector<1x128xf32>
    %14 = vector.broadcast %13 : vector<1x128xf32> to vector<8x128xf32>
    %15 = arith.mulf %11, %14 : vector<8x128xf32>
    %cst_11 = arith.constant dense<0.000000e+00> : vector<8xf32>
    %16 = vector.multi_reduction <add>, %15, %cst_11 [1] : vector<8x128xf32> to vector<8xf32>
    %17 = vector.shape_cast %16 : vector<8xf32> to vector<8x1xf32>
    %18 = arith.addf %12, %17 : vector<8x1xf32>
    %c0_12 = arith.constant 0 : index
    %c0_13 = arith.constant 0 : index
    %19 = vector.load %arg8[%c0_12, %c0_13] : memref<8x1xf32, #tpu.memory_space<vmem>>, vector<8x1xf32>
    tpu.vector_store %arg8[%c0_12, %c0_13], %18 {strides = array<i32>} : memref<8x1xf32, #tpu.memory_space<vmem>>, vector<8x1xf32>,
    %c0_i32_14 = arith.constant 0 : i32
    %20 = arith.cmpi eq, %arg1, %c0_i32_14 : i32
    %21 = arith.extui %20 : i1 to i32
    %c0_i32_15 = arith.constant 0 : i32
    %22 = arith.cmpi ne, %21, %c0_i32_15 : i32
    scf.if %22 {
      %c0_16 = arith.constant 0 : index
      %c0_17 = arith.constant 0 : index
      %23 = vector.load %arg8[%c0_16, %c0_17] : memref<8x1xf32, #tpu.memory_space<vmem>>, vector<8x1xf32>
      %c0_18 = arith.constant 0 : index
      %c0_19 = arith.constant 0 : index
      %24 = memref.load %arg6[%c0_18, %c0_19] : memref<1x1xf32, #tpu.memory_space<smem>>
      %25 = vector.broadcast %24 : f32 to vector<8x1xf32>
      %26 = arith.addf %23, %25 : vector<8x1xf32>
      %27 = math.absf %26 : vector<8x1xf32>
      %cst_20 = arith.constant 0.000000e+00 : f32
      %28 = vector.broadcast %cst_20 : f32 to vector<8x1xf32>
      %29 = arith.subf %28, %27 : vector<8x1xf32>
      %30 = math.exp %29 : vector<8x1xf32>
      %31 = math.log1p %30 : vector<8x1xf32>
      %cst_21 = arith.constant 0.000000e+00 : f32
      %32 = vector.broadcast %cst_21 : f32 to vector<8x1xf32>
      %33 = arith.maximumf %26, %32 : vector<8x1xf32>
      %34 = arith.addf %31, %33 : vector<8x1xf32>
      %cst_22 = arith.constant 0.000000e+00 : f32
      %35 = vector.broadcast %cst_22 : f32 to vector<8x1xf32>
      %36 = arith.subf %35, %34 : vector<8x1xf32>
      %c0_23 = arith.constant 0 : index
      %c0_24 = arith.constant 0 : index
      %37 = vector.load %arg7[%c0_23, %c0_24] : memref<8x2xf32, #tpu.memory_space<vmem>>, vector<8x1xf32>
      tpu.vector_store %arg7[%c0_23, %c0_24], %36 {strides = array<i32>} : memref<8x2xf32, #tpu.memory_space<vmem>>, vector<8x1xf32>,
      %cst_25 = arith.constant 0.000000e+00 : f32
      %38 = vector.broadcast %cst_25 : f32 to vector<8x1xf32>
      %39 = arith.subf %38, %26 : vector<8x1xf32>
      %cst_26 = arith.constant 0.000000e+00 : f32
      %40 = vector.broadcast %cst_26 : f32 to vector<8x1xf32>
      %41 = arith.maximumf %39, %40 : vector<8x1xf32>
      %42 = arith.addf %31, %41 : vector<8x1xf32>
      %cst_27 = arith.constant 0.000000e+00 : f32
      %43 = vector.broadcast %cst_27 : f32 to vector<8x1xf32>
      %44 = arith.subf %43, %42 : vector<8x1xf32>
      %c0_28 = arith.constant 0 : index
      %c1 = arith.constant 1 : index
      %45 = vector.load %arg7[%c0_28, %c1] : memref<8x2xf32, #tpu.memory_space<vmem>>, vector<8x1xf32>
      tpu.vector_store %arg7[%c0_28, %c1], %44 {strides = array<i32>} : memref<8x2xf32, #tpu.memory_space<vmem>>, vector<8x1xf32>,
    } else {
    }
    return
  }
  func.func @transform_0(%arg0: i32, %arg1: i32) -> (i32, i32) {
    %c0_i32 = arith.constant 0 : i32
    %c0_i32_0 = arith.constant 0 : i32
    return %arg0, %c0_i32 : i32, i32
  }
  func.func @transform_1(%arg0: i32, %arg1: i32) -> (i32, i32) {
    %c0_i32 = arith.constant 0 : i32
    %c0_i32_0 = arith.constant 0 : i32
    return %c0_i32, %arg1 : i32, i32
  }
  func.func @transform_2(%arg0: i32, %arg1: i32) -> (i32, i32) {
    %c0_i32 = arith.constant 0 : i32
    %c0_i32_0 = arith.constant 0 : i32
    return %c0_i32, %arg1 : i32, i32
  }
  func.func @transform_3(%arg0: i32, %arg1: i32) -> (i32, i32) {
    %c0_i32 = arith.constant 0 : i32
    %c0_i32_0 = arith.constant 0 : i32
    return %c0_i32, %arg1 : i32, i32
  }
  func.func @transform_4(%arg0: i32, %arg1: i32) -> (i32, i32) {
    %c0_i32 = arith.constant 0 : i32
    %c0_i32_0 = arith.constant 0 : i32
    %c0_i32_1 = arith.constant 0 : i32
    return %c0_i32, %c0_i32_0 : i32, i32
  }
  func.func @transform_5(%arg0: i32, %arg1: i32) -> (i32, i32) {
    %c0_i32 = arith.constant 0 : i32
    %c0_i32_0 = arith.constant 0 : i32
    return %arg0, %c0_i32 : i32, i32
  }
}

</mosaic_0001>

<llo_original>
// kernel: tpu_custom_call.1
$region0: #{tpu_custom_call.1}
  #allocation0 [shape = 'u32[]', space=smem, size = 0x4, offset = 0x4, fixed_abs, tag = 'smem constant byte address 0x4 - core index']
  #allocation1 [shape = 'u32[144,128]{1,0:T(1,128)}', space=vmem, size = 0x12000, scoped, tag = 'internal scratch']
  #allocation2 [shape = 'f32[8,1]{1,0:T(8,128)}', space=vmem, size = 0x1000, scoped, tag = 'scratch operand']
  #allocation3 [shape = 'f32[1,1]{1,0:T(1,128)S(6)}', space=smem, size = 0x200, scoped, tag = 'scoped memory for tpu_custom_call.1']
  %s0 = inlined_call_operand.hbm [shape: f32[8,32], index: 0, kind: input, shape index: {}]
  %s1 = inlined_call_operand.hbm [shape: bf16[32,128], index: 1, kind: input, shape index: {}]
  %s2 = inlined_call_operand.vmem [shape: f32[1,128], index: 2, kind: input, shape index: {}]
  %s3 = inlined_call_operand.vmem [shape: f32[1,128], index: 3, kind: input, shape index: {}]
  %s4 = inlined_call_operand.<no memory space> [shape: f32[1,1], index: 4, kind: input, shape index: {}]
  %s5 = inlined_call_operand.vmem [shape: f32[8,2], index: 5, kind: output, shape index: {}]
  %s6 = sld [smem:[#allocation0]]
  $region46: #{tpu_custom_call.1} parent=0
    _
  %s8 = ssub.s32 1, %s6
  %s9 = scalar_select 0, %s8, %s6
  %10 = sst [smem:[#allocation3]] %s4
  $region1: #{tpu_custom_call.1} parent=0
    #allocation4 [shape = 'u8[4096]{0}', space=vmem, size = 0x1000, scoped, tag = 'input window, operand 0, single buffered']
    #allocation5 [shape = 's32[1]{0}', space=sflag, size = 0x4, scoped, tag = 'scoped memory for tpu_custom_call.1']
    #allocation6 [shape = 'u8[8192]{0}', space=vmem, size = 0x2000, scoped, tag = 'input window, operand 1, single buffered']
    #allocation7 [shape = 's32[1]{0}', space=sflag, size = 0x4, scoped, tag = 'scoped memory for tpu_custom_call.1']
    %11 = vsyncpa [#allocation5], 0
    %12 = vsyncpa [#allocation7], 0
    // Predicated region
    $region2: #{tpu_custom_call.1} parent=1 // pred_check
      _
    $region3: #{tpu_custom_call.1} parent=1 // pred_check_branch
      %14 = sbr.rel (0) target = $region5
    $region4: #{tpu_custom_call.1} parent=1 // pred_region
      %s16 = ssub.s32 128, 128
      %17 = vsyncadd [#allocation5], %s16
      %s19 = sshll.u32 [#allocation4], 4
      %s20 = int_to_ptr.vmem [resolvable:$true] %s19
      %22 = dma.hbm_to_vmem [thread:$0]  %s0, 128, %s20, [#allocation5]
    $region5: #{tpu_custom_call.1} parent=1 // pred_fallthru
      _
    // Predicated region
    $region6: #{tpu_custom_call.1} parent=1 // pred_check
      _
    $region7: #{tpu_custom_call.1} parent=1 // pred_check_branch
      %24 = sbr.rel (0) target = $region9
    $region8: #{tpu_custom_call.1} parent=1 // pred_region
      %s26 = ssub.s32 256, 256
      %27 = vsyncadd [#allocation7], %s26
      %s28 = sshll.u32 [#allocation6], 4
      %s29 = int_to_ptr.vmem [resolvable:$true] %s28
      %34 = dma.hbm_to_vmem [thread:$0]  %s1, 256, %s29, [#allocation7], 64, 64, 4
    $region9: #{tpu_custom_call.1} parent=1 // pred_fallthru
      _
    // Predicated region
    $region10: #{tpu_custom_call.1} parent=1 // pred_check
      _
    $region11: #{tpu_custom_call.1} parent=1 // pred_check_branch
      %36 = sbr.rel (0) target = $region13
    $region12: #{tpu_custom_call.1} parent=1 // pred_region
      _
    $region13: #{tpu_custom_call.1} parent=1 // pred_fallthru
      _
    // Predicated region
    $region14: #{tpu_custom_call.1} parent=1 // pred_check
      _
    $region15: #{tpu_custom_call.1} parent=1 // pred_check_branch
      %38 = sbr.rel (0) target = $region17
    $region16: #{tpu_custom_call.1} parent=1 // pred_region
      _
    $region17: #{tpu_custom_call.1} parent=1 // pred_fallthru
      _
    // Predicated region
    $region18: #{tpu_custom_call.1} parent=1 // pred_check
      _
    $region19: #{tpu_custom_call.1} parent=1 // pred_check_branch
      %40 = sbr.rel (0) target = $region21
    $region20: #{tpu_custom_call.1} parent=1 // pred_region
      _
    $region21: #{tpu_custom_call.1} parent=1 // pred_fallthru
      _
    // Predicated region
    $region22: #{tpu_custom_call.1} parent=1 // pred_check
      _
    $region23: #{tpu_custom_call.1} parent=1 // pred_check_branch
      %42 = sbr.rel (0) target = $region25
    $region24: #{tpu_custom_call.1} parent=1 // pred_region
      %43 = dma.done [#allocation5], 128
    $region25: #{tpu_custom_call.1} parent=1 // pred_fallthru
      _
    // Predicated region
    $region26: #{tpu_custom_call.1} parent=1 // pred_check
      _
    $region27: #{tpu_custom_call.1} parent=1 // pred_check_branch
      %45 = sbr.rel (0) target = $region29
    $region28: #{tpu_custom_call.1} parent=1 // pred_region
      %46 = dma.done [#allocation7], 256
    $region29: #{tpu_custom_call.1} parent=1 // pred_fallthru
      _
    %p48 = scmp.eq.s32.totalorder 0, 0
    // Predicated region
    $region30: #{tpu_custom_call.1} parent=1 // pred_check
      %p49 = pneg %p48
    $region31: #{tpu_custom_call.1} parent=1 // pred_check_branch
      %51 = sbr.rel (%p49) target = $region33
    $region32: #{tpu_custom_call.1} parent=1 // pred_region
      %vm52 = vcmask 7168
      %53 = vst.msk [vmem:[#allocation2] sm:$0xff] %vm52, 0.0
    $region33: #{tpu_custom_call.1} parent=1 // pred_fallthru
      _
    %v54 = vld [vmem:[#allocation4] sm:$0xff]
    %v55 = vpack.c.bf16 %v54, %v54
    %v56 = vld [vmem:[#allocation6] sm:$0xf]
    %v57 = vld [vmem:[#allocation6 + $0x4] sm:$0xf]
    %v58 = vld [vmem:[#allocation6 + $0x8] sm:$0xf]
    %v59 = vld [vmem:[#allocation6 + $0xc] sm:$0xf]
    %v60 = vld [vmem:[%s2] sm:$0x1]
    %v62 = vlaneseq
    %v63 = vshrl.u32 %v62, 7
    %v64 = vsub.s32 0, %v63
    %v65 = vrot.slane %v60, %v64
    %v71 = vunpack.c.l.b16 %v56
    %v72 = vunpack.c.l.b16 %v57
    %v73 = vunpack.c.l.b16 %v58
    %v74 = vunpack.c.l.b16 %v59
    %v75 = vpack.c.b16 %v72, %v71
    %v76 = vpack.c.b16 %v74, %v73
    %vm79 = vcmask 261120
    %v81 = vsel %vm79, %v55, 0
    %83 = vmatprep.subr.bf16.mxu0 0
    %84 = vmatpush1.bf16.msra.mxu0 %v75
    %85 = vmatprep.subr.bf16.mxu0 0
    %86 = vmatpush1.bf16.msra.mxu0 %v76
    %87 = vmatprep.subr.bf16.mxu0 0
    %88 = vmatpush1.bf16.msra.mxu0 0
    %89 = vmatprep.subr.bf16.mxu0 0
    %90 = vmatpush1.bf16.msra.mxu0 0
    %91 = vmatprep.subr.bf16.mxu0 0
    %92 = vmatpush1.bf16.msra.mxu0 0
    %93 = vmatprep.subr.bf16.mxu0 0
    %94 = vmatpush1.bf16.msra.mxu0 0
    %95 = vmatprep.subr.bf16.mxu0 0
    %96 = vmatpush1.bf16.msra.mxu0 0
    %97 = vmatprep.subr.bf16.mxu0 0
    %98 = vmatpush1.bf16.msra.mxu0 0
    %99 = vmatprep.subr.bf16.mxu0 0
    %100 = vmatpush1.bf16.msra.mxu0 0
    %101 = vmatprep.subr.bf16.mxu0 0
    %102 = vmatpush1.bf16.msra.mxu0 0
    %103 = vmatprep.subr.bf16.mxu0 0
    %104 = vmatpush1.bf16.msra.mxu0 0
    %105 = vmatprep.subr.bf16.mxu0 0
    %106 = vmatpush1.bf16.msra.mxu0 0
    %107 = vmatprep.subr.bf16.mxu0 0
    %108 = vmatpush1.bf16.msra.mxu0 0
    %109 = vmatprep.subr.bf16.mxu0 0
    %110 = vmatpush1.bf16.msra.mxu0 0
    %111 = vmatprep.subr.bf16.mxu0 0
    %112 = vmatpush1.bf16.msra.mxu0 0
    %113 = vmatprep.subr.bf16.mxu0 0
    %114 = vmatpush1.bf16.msra.mxu0 0
    %115 = vmatprep.mubr.bf16.mxu0 0
    %116 = vmatmul.mubr.bf16.gmra.mrb[0].mxu0 %v81
    %v117 = vpop.f32.mrb[0].mxu0
    %v118 = vadd.f32 %v65, %v117
    %v119 = vpop.f32.mrb[0].mxu0
    %v120 = vpop.f32.mrb[0].mxu0
    %v121 = vpop.f32.mrb[0].mxu0
    %122 = vdwg.mxu0
    %v123 = vmax.f32 %v118, 0.0
    %v124 = vld [vmem:[#allocation2] sm:$0xff]
    %v125 = vld [vmem:[%s3] sm:$0x1]
    %v127 = vlaneseq
    %v128 = vshrl.u32 %v127, 7
    %v129 = vsub.s32 0, %v128
    %v130 = vrot.slane %v125, %v129
    %v132 = vmul.f32 %v123, %v130
    %133 = vadd.xlane.f32.xlu0 %v132
    %v134 = vpop.xlane.xlu0 %133
    %v135 = vadd.f32 %v124, %v134
    %vm136 = vcmask 7168
    %137 = vst.msk [vmem:[#allocation2] sm:$0xff] %vm136, %v135
    // Predicated region
    $region34: #{tpu_custom_call.1} parent=1 // pred_check
      %p138 = pneg %p48
    $region35: #{tpu_custom_call.1} parent=1 // pred_check_branch
      %140 = sbr.rel (%p138) target = $region37
    $region36: #{tpu_custom_call.1} parent=1 // pred_region
      %v141 = vld [vmem:[#allocation2] sm:$0xff]
      %s142 = sld [smem:[#allocation3]]
      %v143 = vstv %s142
      %v144 = vadd.f32 %v141, %v143
      %v145 = vand.u32 2147483647, %v144
      %v146 = vsub.f32 0.0, %v145
      %v147 = vmul.f32 %v146, 1.442695
      %v148 = vpow.pop %v147
      %v149 = vadd.f32 %v148, 1.0
      %v150 = vlog2.pop %v149
      %v151 = vmul.f32 %v150, 0.6931472
      %v152 = vmul.f32 -0.5, %v148
      %v153 = vadd.f32 %v152, 1.0
      %v154 = vmul.f32 %v153, %v148
      %v155 = vand.u32 2147483647, %v148
      %vm156 = vcmp.lt.f32.partialorder %v155, 0.0004427343
      %v157 = vsel %vm156, %v154, %v151
      %v158 = vmax.f32 %v144, 0.0
      %v159 = vadd.f32 %v157, %v158
      %v160 = vsub.f32 0.0, %v159
      %161 = vst.msk [vmem:[%s5] sm:$0xff] %vm136, %v160
      %v162 = vsub.f32 0.0, %v144
      %v163 = vmax.f32 %v162, 0.0
      %v164 = vadd.f32 %v157, %v163
      %v165 = vsub.f32 0.0, %v164
      %167 = vrot.lane.b32.xlu0 %v165, 1
      %v168 = vpop.permute.xlu0 %167
      %vm170 = vcmask 15368
      %171 = vst.msk [vmem:[%s5] sm:$0xff] %vm170, %v168
    $region37: #{tpu_custom_call.1} parent=1 // pred_fallthru
      _
    // Predicated region
    $region38: #{tpu_custom_call.1} parent=1 // pred_check
      _
    $region39: #{tpu_custom_call.1} parent=1 // pred_check_branch
      %173 = sbr.rel (0) target = $region41
    $region40: #{tpu_custom_call.1} parent=1 // pred_region
      _
    $region41: #{tpu_custom_call.1} parent=1 // pred_fallthru
      _
    // Predicated region
    $region42: #{tpu_custom_call.1} parent=1 // pred_check
      _
    $region43: #{tpu_custom_call.1} parent=1 // pred_check_branch
      %175 = sbr.rel (0) target = $region45
    $region44: #{tpu_custom_call.1} parent=1 // pred_region
      _
    $region45: #{tpu_custom_call.1} parent=1 // pred_fallthru
      _
    %176 = vsyncpa [#allocation5], 1
    %177 = vsyncpa [#allocation7], 1

</llo_original>
